<compile_context>
chip_gen: v7x
topology: tpu7x:2x2x1
jax: 0.10.0
libtpu: 0.0.40
codegen_flags: <defaults>
</compile_context>

<pallas_src>
import functools

import jax
import jax.numpy as jnp
from jax.experimental import pallas as pl
from jax.experimental.pallas import tpu as pltpu

_LANE = 128       # vreg lane width
_ROW_TILE = 16    # bf16 sublane quantum (also a multiple of the f32 quantum 8)


def _round_up(x, m):
    return ((x + m - 1) // m) * m


def _mlp_kernel(x_ref, w0_ref, b0_ref, w1_ref, b1_ref, wl_ref, bl_ref, o_ref):
    # obs tile arrives as f32; cast to the weights' compute dtype in-register
    # (VPU cast hides under the pipeline, avoids a wrapper-side HBM round-trip).
    x = x_ref[...].astype(w0_ref.dtype)
    # Hidden layer 0: MXU matmul (bf16 operands, f32 accumulate), then
    # bias + relu on the f32 accumulator (VPU-friendly on all chips).
    h = jnp.dot(x, w0_ref[...], preferred_element_type=jnp.float32)
    h = jnp.maximum(h + b0_ref[...], 0.0)
    # Hidden layer 1.
    h = jnp.dot(h.astype(w1_ref.dtype), w1_ref[...],
                preferred_element_type=jnp.float32)
    h = jnp.maximum(h + b1_ref[...], 0.0)
    # Last fc: linear + bias, identity output activation.  Output block is
    # (tb, d_out) -- narrow masked store beats 16x padded write amplification.
    out = jnp.dot(h.astype(wl_ref.dtype), wl_ref[...],
                  preferred_element_type=jnp.float32)
    o_ref[...] = (out + bl_ref[...]).astype(o_ref.dtype)


def prepare_params(params, compute_dtype=jnp.bfloat16):
    """One-time padding/casting of parameters (call OUTSIDE the hot loop).

    params: (W0, b0, W1, b1, W_last, b_last) with weights stored [in, out]
            and biases stored [1, out], all float32 (reference layout).
    Returns device arrays ready to feed to the kernel:
      * hidden widths zero-padded to 128 lanes (exact: relu(0*x+0)=0 feeds
        zero rows of the next weight matrix),
      * W_last row-padded only (output columns stay at the true width),
      * weights in compute_dtype (bf16), biases kept f32.
    """
    w0, b0, w1, b1, wl, bl = params
    h0, h1 = w0.shape[1], w1.shape[1]
    h0p, h1p = _round_up(h0, _LANE), _round_up(h1, _LANE)

    w0p = jnp.pad(w0, ((0, 0), (0, h0p - h0))).astype(compute_dtype)
    b0p = jnp.pad(b0, ((0, 0), (0, h0p - h0))).astype(jnp.float32)
    w1p = jnp.pad(w1, ((0, h0p - h0), (0, h1p - h1))).astype(compute_dtype)
    b1p = jnp.pad(b1, ((0, 0), (0, h1p - h1))).astype(jnp.float32)
    wlp = jnp.pad(wl, ((0, h1p - h1), (0, 0))).astype(compute_dtype)
    blp = bl.astype(jnp.float32)
    return (w0p, b0p, w1p, b1p, wlp, blp)


def mlp_policy_forward(obs, prepared_params, *, tb=512):
    """Fused MLP forward.

    obs: [B, input_size] float32 (cast to bf16 inside the kernel).
    prepared_params: output of prepare_params() (pre-padded, pre-cast).
    """
    w0p, b0p, w1p, b1p, wlp, blp = prepared_params
    B, d_in = obs.shape
    h0p, h1p = w0p.shape[1], w1p.shape[1]
    d_out = wlp.shape[1]

    # --- batch tiling ---------------------------------------------------
    # Balance tiles to ~cdiv(B, n_tiles) rounded to 16 so last-tile padding
    # stays under one sublane group; force >= 2 grid steps when there is
    # enough work so v7x's second TensorCore is not left idle.
    n_tiles = max(1, pl.cdiv(B, tb))
    if n_tiles < 2 and B >= 2 * _ROW_TILE:
        n_tiles = 2
    tb_eff = _round_up(pl.cdiv(B, n_tiles), _ROW_TILE)
    Bp = _round_up(B, tb_eff)
    grid = (Bp // tb_eff,)

    obs_p = obs if Bp == B else jnp.pad(obs, ((0, Bp - B), (0, 0)))

    operands = (obs_p, w0p, b0p, w1p, b1p, wlp, blp)
    flops = 2 * Bp * (d_in * h0p + h0p * h1p + h1p * d_out)
    bytes_accessed = (sum(int(x.size) * x.dtype.itemsize for x in operands)
                      + Bp * d_out * 4)

    # Weights/biases use constant index maps, so Pallas does not re-issue
    # their DMAs between grid steps; their total footprint is < 100 KiB, so
    # the default double-buffering overhead is negligible.
    full = lambda shape: pl.BlockSpec(shape, lambda i: (0, 0))

    out = pl.pallas_call(
        _mlp_kernel,
        out_shape=jax.ShapeDtypeStruct((Bp, d_out), jnp.float32),
        grid_spec=pltpu.PrefetchScalarGridSpec(
            num_scalar_prefetch=0,
            grid=grid,
            in_specs=[
                pl.BlockSpec((tb_eff, d_in), lambda i: (i, 0)),   # obs tile (f32)
                full((d_in, h0p)),                                # W0 (lane padded)
                full((1, h0p)),                                   # b0
                full((h0p, h1p)),                                 # W1
                full((1, h1p)),                                   # b1
                full((h1p, d_out)),                               # W_last (row padded)
                full((1, d_out)),                                 # b_last
            ],
            out_specs=pl.BlockSpec((tb_eff, d_out), lambda i: (i, 0)),
        ),
        compiler_params=pltpu.CompilerParams(
            dimension_semantics=("parallel",)),
        cost_estimate=pl.CostEstimate(
            flops=flops, transcendentals=0, bytes_accessed=bytes_accessed),
    )(*operands)

    return out[:B] if Bp != B else out


def init_mlp_params(key, input_size, hidden_sizes, output_size,
                    init_w=0.003, b_init_value=0.1):
    """Deterministic init mirroring rlkit: fanin_init for hidden weights,
    bias filled with 0.1; last layer uniform(-init_w, init_w)."""
    params = []
    in_size = input_size
    k = key
    for next_size in hidden_sizes:
        k, kw = jax.random.split(k)
        bound = 1.0 / jnp.sqrt(jnp.float32(in_size))          # ptu.fanin_init
        w = jax.random.uniform(kw, (in_size, next_size), jnp.float32,
                               minval=-bound, maxval=bound)   # stored [in, out]
        b = jnp.full((1, next_size), b_init_value, jnp.float32)
        params.extend([w, b])
        in_size = next_size
    k, kw, kb = jax.random.split(k, 3)
    wl = jax.random.uniform(kw, (in_size, output_size), jnp.float32,
                            minval=-init_w, maxval=init_w)
    bl = jax.random.uniform(kb, (1, output_size), jnp.float32,
                            minval=-init_w, maxval=init_w)
    params.extend([wl, bl])
    return tuple(params)


def mlp_reference(obs, params):
    w0, b0, w1, b1, wl, bl = params
    h = jnp.maximum(obs @ w0 + b0, 0.0)
    h = jnp.maximum(h @ w1 + b1, 0.0)
    return h @ wl + bl


if __name__ == "__main__":
    # TODO(synk): layer_norm=True path and obs_normalizer are disabled in the
    # module defaults and are not implemented in the kernel.
    key = jax.random.PRNGKey(0)
    input_size, output_size = 32, 8
    hidden_sizes = (64, 64)

    kobs, kparams = jax.random.split(key)
    params = init_mlp_params(kparams, input_size, hidden_sizes, output_size)
    # One-time parameter preparation (padding + bf16 cast), outside the jit.
    prepared = jax.block_until_ready(prepare_params(params))

    # Small shape (single grid step).
    B0 = 8
    obs0 = jax.random.normal(kobs, (B0, input_size), jnp.float32)
    fwd = jax.jit(functools.partial(mlp_policy_forward, tb=512))
    out0 = jax.block_until_ready(fwd(obs0, prepared))
    ref0 = mlp_reference(obs0, params)
    assert out0.shape == (B0, output_size)
    assert jnp.allclose(out0, ref0, atol=2e-2, rtol=2e-2), "mismatch (B=8)"

    # Ragged batch with a multi-step grid (exercises tiling + batch padding).
    B1 = 60
    obs1 = jax.random.normal(jax.random.PRNGKey(1), (B1, input_size),
                             jnp.float32)
    fwd2 = jax.jit(functools.partial(mlp_policy_forward, tb=32))
    out1 = jax.block_until_ready(fwd2(obs1, prepared))
    ref1 = mlp_reference(obs1, params)
    assert out1.shape == (B1, output_size)
    assert jnp.allclose(out1, ref1, atol=2e-2, rtol=2e-2), "mismatch (B=60)"

    # Mid-sized batch: default tb, exercises the forced 2-step grid split
    # (v7x dual-core path) and the balanced tile size (tb_eff=160, Bp=320).
    B2 = 300
    obs2 = jax.random.normal(jax.random.PRNGKey(2), (B2, input_size),
                             jnp.float32)
    out2 = jax.block_until_ready(fwd(obs2, prepared))
    ref2 = mlp_reference(obs2, params)
    assert out2.shape == (B2, output_size)
    assert jnp.allclose(out2, ref2, atol=2e-2, rtol=2e-2), "mismatch (B=300)"

    print("KERNEL_OK")
</pallas_src>

<mosaic_0001>
module attributes {stable_mosaic.version = 11 : i64} {
  func.func @_mlp_kernel(%arg0: i32, %arg1: memref<16x32xf32, #tpu.memory_space<vmem>>, %arg2: memref<32x128xbf16, #tpu.memory_space<vmem>>, %arg3: memref<1x128xf32, #tpu.memory_space<vmem>>, %arg4: memref<128x128xbf16, #tpu.memory_space<vmem>>, %arg5: memref<1x128xf32, #tpu.memory_space<vmem>>, %arg6: memref<128x8xbf16, #tpu.memory_space<vmem>>, %arg7: memref<1x8xf32, #tpu.memory_space<vmem>>, %arg8: memref<16x8xf32, #tpu.memory_space<vmem>>) attributes {dimension_semantics = [#tpu.dimension_semantics<parallel>], iteration_bounds = array<i64: 1>, scalar_prefetch = 0 : i64, scratch_operands = 0 : i64, tpu.core_type = #tpu.core_type<tc>, window_params = [{transform_indices = @transform_0, window_bounds = array<i64: 16, 32>}, {pipeline_mode = #tpu.pipeline_mode<synchronous>, transform_indices = @transform_1, window_bounds = array<i64: 32, 128>}, {pipeline_mode = #tpu.pipeline_mode<synchronous>, transform_indices = @transform_2, window_bounds = array<i64: 1, 128>}, {pipeline_mode = #tpu.pipeline_mode<synchronous>, transform_indices = @transform_3, window_bounds = array<i64: 128, 128>}, {pipeline_mode = #tpu.pipeline_mode<synchronous>, transform_indices = @transform_4, window_bounds = array<i64: 1, 128>}, {pipeline_mode = #tpu.pipeline_mode<synchronous>, transform_indices = @transform_5, window_bounds = array<i64: 128, 8>}, {pipeline_mode = #tpu.pipeline_mode<synchronous>, transform_indices = @transform_6, window_bounds = array<i64: 1, 8>}, {transform_indices = @transform_7, window_bounds = array<i64: 16, 8>}]} {
    %c0 = arith.constant 0 : index
    %c0_0 = arith.constant 0 : index
    %0 = vector.load %arg1[%c0, %c0_0] : memref<16x32xf32, #tpu.memory_space<vmem>>, vector<16x32xf32>
    %1 = arith.truncf %0 : vector<16x32xf32> to vector<16x32xbf16>
    %c0_1 = arith.constant 0 : index
    %c0_2 = arith.constant 0 : index
    %2 = vector.load %arg2[%c0_1, %c0_2] : memref<32x128xbf16, #tpu.memory_space<vmem>>, vector<32x128xbf16>
    %cst = arith.constant dense<0.000000e+00> : vector<16x128xf32>
    %3 = tpu.matmul %1, %2, %cst {dimension_numbers = #tpu.dot_dimension_numbers<[1], [0], [0], [1], [0, 0, 1, 1], [], []>} : vector<16x32xbf16>, vector<32x128xbf16>, vector<16x128xf32> -> vector<16x128xf32>
    %c0_3 = arith.constant 0 : index
    %c0_4 = arith.constant 0 : index
    %4 = vector.load %arg3[%c0_3, %c0_4] : memref<1x128xf32, #tpu.memory_space<vmem>>, vector<1x128xf32>
    %5 = vector.broadcast %4 : vector<1x128xf32> to vector<16x128xf32>
    %6 = arith.addf %3, %5 : vector<16x128xf32>
    %cst_5 = arith.constant 0.000000e+00 : f32
    %7 = vector.broadcast %cst_5 : f32 to vector<16x128xf32>
    %8 = arith.maximumf %6, %7 : vector<16x128xf32>
    %9 = arith.truncf %8 : vector<16x128xf32> to vector<16x128xbf16>
    %c0_6 = arith.constant 0 : index
    %c0_7 = arith.constant 0 : index
    %10 = vector.load %arg4[%c0_6, %c0_7] : memref<128x128xbf16, #tpu.memory_space<vmem>>, vector<128x128xbf16>
    %cst_8 = arith.constant dense<0.000000e+00> : vector<16x128xf32>
    %11 = tpu.matmul %9, %10, %cst_8 {dimension_numbers = #tpu.dot_dimension_numbers<[1], [0], [0], [1], [0, 0, 1, 1], [], []>} : vector<16x128xbf16>, vector<128x128xbf16>, vector<16x128xf32> -> vector<16x128xf32>
    %c0_9 = arith.constant 0 : index
    %c0_10 = arith.constant 0 : index
    %12 = vector.load %arg5[%c0_9, %c0_10] : memref<1x128xf32, #tpu.memory_space<vmem>>, vector<1x128xf32>
    %13 = vector.broadcast %12 : vector<1x128xf32> to vector<16x128xf32>
    %14 = arith.addf %11, %13 : vector<16x128xf32>
    %cst_11 = arith.constant 0.000000e+00 : f32
    %15 = vector.broadcast %cst_11 : f32 to vector<16x128xf32>
    %16 = arith.maximumf %14, %15 : vector<16x128xf32>
    %17 = arith.truncf %16 : vector<16x128xf32> to vector<16x128xbf16>
    %c0_12 = arith.constant 0 : index
    %c0_13 = arith.constant 0 : index
    %18 = vector.load %arg6[%c0_12, %c0_13] : memref<128x8xbf16, #tpu.memory_space<vmem>>, vector<128x8xbf16>
    %cst_14 = arith.constant dense<0.000000e+00> : vector<16x8xf32>
    %19 = tpu.matmul %17, %18, %cst_14 {dimension_numbers = #tpu.dot_dimension_numbers<[1], [0], [0], [1], [0, 0, 1, 1], [], []>} : vector<16x128xbf16>, vector<128x8xbf16>, vector<16x8xf32> -> vector<16x8xf32>
    %c0_15 = arith.constant 0 : index
    %c0_16 = arith.constant 0 : index
    %20 = vector.load %arg7[%c0_15, %c0_16] : memref<1x8xf32, #tpu.memory_space<vmem>>, vector<1x8xf32>
    %21 = vector.broadcast %20 : vector<1x8xf32> to vector<16x8xf32>
    %22 = arith.addf %19, %21 : vector<16x8xf32>
    %c0_17 = arith.constant 0 : index
    %c0_18 = arith.constant 0 : index
    %23 = vector.load %arg8[%c0_17, %c0_18] : memref<16x8xf32, #tpu.memory_space<vmem>>, vector<16x8xf32>
    tpu.vector_store %arg8[%c0_17, %c0_18], %22 {strides = array<i32>} : memref<16x8xf32, #tpu.memory_space<vmem>>, vector<16x8xf32>,
    return
  }
  func.func @transform_0(%arg0: i32) -> (i32, i32) {
    %c0_i32 = arith.constant 0 : i32
    %c0_i32_0 = arith.constant 0 : i32
    return %arg0, %c0_i32 : i32, i32
  }
  func.func @transform_1(%arg0: i32) -> (i32, i32) {
    %c0_i32 = arith.constant 0 : i32
    %c0_i32_0 = arith.constant 0 : i32
    %c0_i32_1 = arith.constant 0 : i32
    return %c0_i32, %c0_i32_0 : i32, i32
  }
  func.func @transform_2(%arg0: i32) -> (i32, i32) {
    %c0_i32 = arith.constant 0 : i32
    %c0_i32_0 = arith.constant 0 : i32
    %c0_i32_1 = arith.constant 0 : i32
    return %c0_i32, %c0_i32_0 : i32, i32
  }
  func.func @transform_3(%arg0: i32) -> (i32, i32) {
    %c0_i32 = arith.constant 0 : i32
    %c0_i32_0 = arith.constant 0 : i32
    %c0_i32_1 = arith.constant 0 : i32
    return %c0_i32, %c0_i32_0 : i32, i32
  }
  func.func @transform_4(%arg0: i32) -> (i32, i32) {
    %c0_i32 = arith.constant 0 : i32
    %c0_i32_0 = arith.constant 0 : i32
    %c0_i32_1 = arith.constant 0 : i32
    return %c0_i32, %c0_i32_0 : i32, i32
  }
  func.func @transform_5(%arg0: i32) -> (i32, i32) {
    %c0_i32 = arith.constant 0 : i32
    %c0_i32_0 = arith.constant 0 : i32
    %c0_i32_1 = arith.constant 0 : i32
    return %c0_i32, %c0_i32_0 : i32, i32
  }
  func.func @transform_6(%arg0: i32) -> (i32, i32) {
    %c0_i32 = arith.constant 0 : i32
    %c0_i32_0 = arith.constant 0 : i32
    %c0_i32_1 = arith.constant 0 : i32
    return %c0_i32, %c0_i32_0 : i32, i32
  }
  func.func @transform_7(%arg0: i32) -> (i32, i32) {
    %c0_i32 = arith.constant 0 : i32
    %c0_i32_0 = arith.constant 0 : i32
    return %arg0, %c0_i32 : i32, i32
  }
}

</mosaic_0001>

<llo_original>
// kernel: mlp_policy_forward.1
$region0: #{mlp_policy_forward.1}
  #allocation0 [shape = 'u32[]', space=smem, size = 0x4, offset = 0x4, fixed_abs, tag = 'smem constant byte address 0x4 - core index']
  #allocation1 [shape = 'u32[144,128]{1,0:T(1,128)}', space=vmem, size = 0x12000, scoped, tag = 'internal scratch']
  %s0 = inlined_call_operand.vmem [shape: f32[16,32], index: 0, kind: input, shape index: {}]
  %s1 = inlined_call_operand.vmem [shape: bf16[32,128], index: 1, kind: input, shape index: {}]
  %s2 = inlined_call_operand.vmem [shape: f32[1,128], index: 2, kind: input, shape index: {}]
  %s3 = inlined_call_operand.vmem [shape: bf16[128,128], index: 3, kind: input, shape index: {}]
  %s4 = inlined_call_operand.vmem [shape: f32[1,128], index: 4, kind: input, shape index: {}]
  %s5 = inlined_call_operand.vmem [shape: bf16[128,8], index: 5, kind: input, shape index: {}]
  %s6 = inlined_call_operand.vmem [shape: f32[1,8], index: 6, kind: input, shape index: {}]
  %s7 = inlined_call_operand.vmem [shape: f32[16,8], index: 7, kind: output, shape index: {}]
  %s8 = sld [smem:[#allocation0]]
  $region38: #{mlp_policy_forward.1} parent=0
    _
  %s10 = ssub.s32 1, %s8
  %s11 = scalar_select 0, %s10, %s8
  // Predicated region
  $region2: #{mlp_policy_forward.1} parent=0 // pred_check
    _
  $region3: #{mlp_policy_forward.1} parent=0 // pred_check_branch
    %13 = sbr.rel (0) target = $region5
  $region4: #{mlp_policy_forward.1} parent=0 // pred_region
    _
  $region5: #{mlp_policy_forward.1} parent=0 // pred_fallthru
    _
  // Predicated region
  $region6: #{mlp_policy_forward.1} parent=0 // pred_check
    _
  $region7: #{mlp_policy_forward.1} parent=0 // pred_check_branch
    %15 = sbr.rel (0) target = $region9
  $region8: #{mlp_policy_forward.1} parent=0 // pred_region
    _
  $region9: #{mlp_policy_forward.1} parent=0 // pred_fallthru
    _
  // Predicated region
  $region10: #{mlp_policy_forward.1} parent=0 // pred_check
    _
  $region11: #{mlp_policy_forward.1} parent=0 // pred_check_branch
    %17 = sbr.rel (0) target = $region13
  $region12: #{mlp_policy_forward.1} parent=0 // pred_region
    _
  $region13: #{mlp_policy_forward.1} parent=0 // pred_fallthru
    _
  // Predicated region
  $region14: #{mlp_policy_forward.1} parent=0 // pred_check
    _
  $region15: #{mlp_policy_forward.1} parent=0 // pred_check_branch
    %19 = sbr.rel (0) target = $region17
  $region16: #{mlp_policy_forward.1} parent=0 // pred_region
    _
  $region17: #{mlp_policy_forward.1} parent=0 // pred_fallthru
    _
  // Predicated region
  $region18: #{mlp_policy_forward.1} parent=0 // pred_check
    _
  $region19: #{mlp_policy_forward.1} parent=0 // pred_check_branch
    %21 = sbr.rel (0) target = $region21
  $region20: #{mlp_policy_forward.1} parent=0 // pred_region
    _
  $region21: #{mlp_policy_forward.1} parent=0 // pred_fallthru
    _
  // Predicated region
  $region22: #{mlp_policy_forward.1} parent=0 // pred_check
    _
  $region23: #{mlp_policy_forward.1} parent=0 // pred_check_branch
    %23 = sbr.rel (0) target = $region25
  $region24: #{mlp_policy_forward.1} parent=0 // pred_region
    _
  $region25: #{mlp_policy_forward.1} parent=0 // pred_fallthru
    _
  // Predicated region
  $region26: #{mlp_policy_forward.1} parent=0 // pred_check
    _
  $region27: #{mlp_policy_forward.1} parent=0 // pred_check_branch
    %25 = sbr.rel (0) target = $region29
  $region28: #{mlp_policy_forward.1} parent=0 // pred_region
    _
  $region29: #{mlp_policy_forward.1} parent=0 // pred_fallthru
    _
  %v27 = vld [vmem:[%s0] sm:$0xff]
  %v28 = vld [vmem:[%s0 + $0x8] sm:$0xff]
  %v29 = vpack.c.bf16 %v28, %v27
  %v30 = vld [vmem:[%s1] sm:$0xf]
  %v31 = vld [vmem:[%s1 + $0x4] sm:$0xf]
  %v32 = vld [vmem:[%s1 + $0x8] sm:$0xf]
  %v33 = vld [vmem:[%s1 + $0xc] sm:$0xf]
  %v34 = vld [vmem:[%s2] sm:$0x1]
  %v36 = vlaneseq
  %v37 = vshrl.u32 %v36, 7
  %v38 = vsub.s32 0, %v37
  %v39 = vrot.slane %v34, %v38
  %v45 = vunpack.c.l.b16 %v30
  %v46 = vunpack.c.l.b16 %v31
  %v47 = vunpack.c.l.b16 %v32
  %v48 = vunpack.c.l.b16 %v33
  %v49 = vpack.c.b16 %v46, %v45
  %v50 = vpack.c.b16 %v48, %v47
  %vm53 = vcmask 261120
  %v55 = vsel %vm53, %v29, 0
  %57 = vmatprep.subr.bf16.mxu0 0
  %58 = vmatpush1.bf16.msra.mxu0 %v49
  %59 = vmatprep.subr.bf16.mxu0 0
  %60 = vmatpush1.bf16.msra.mxu0 %v50
  %61 = vmatprep.subr.bf16.mxu0 0
  %62 = vmatpush1.bf16.msra.mxu0 0
  %63 = vmatprep.subr.bf16.mxu0 0
  %64 = vmatpush1.bf16.msra.mxu0 0
  %65 = vmatprep.subr.bf16.mxu0 0
  %66 = vmatpush1.bf16.msra.mxu0 0
  %67 = vmatprep.subr.bf16.mxu0 0
  %68 = vmatpush1.bf16.msra.mxu0 0
  %69 = vmatprep.subr.bf16.mxu0 0
  %70 = vmatpush1.bf16.msra.mxu0 0
  %71 = vmatprep.subr.bf16.mxu0 0
  %72 = vmatpush1.bf16.msra.mxu0 0
  %73 = vmatprep.subr.bf16.mxu0 0
  %74 = vmatpush1.bf16.msra.mxu0 0
  %75 = vmatprep.subr.bf16.mxu0 0
  %76 = vmatpush1.bf16.msra.mxu0 0
  %77 = vmatprep.subr.bf16.mxu0 0
  %78 = vmatpush1.bf16.msra.mxu0 0
  %79 = vmatprep.subr.bf16.mxu0 0
  %80 = vmatpush1.bf16.msra.mxu0 0
  %81 = vmatprep.subr.bf16.mxu0 0
  %82 = vmatpush1.bf16.msra.mxu0 0
  %83 = vmatprep.subr.bf16.mxu0 0
  %84 = vmatpush1.bf16.msra.mxu0 0
  %85 = vmatprep.subr.bf16.mxu0 0
  %86 = vmatpush1.bf16.msra.mxu0 0
  %87 = vmatprep.subr.bf16.mxu0 0
  %88 = vmatpush1.bf16.msra.mxu0 0
  %89 = vmatprep.mubr.bf16.mxu0 0
  %90 = vmatmul.mubr.bf16.gmra.mrb[0].mxu0 %v55
  %v91 = vpop.f32.mrb[0].mxu0
  %v92 = vadd.f32 %v39, %v91
  %v93 = vpop.f32.mrb[0].mxu0
  %v94 = vpop.f32.mrb[0].mxu0
  %v95 = vadd.f32 %v39, %v94
  %v96 = vpop.f32.mrb[0].mxu0
  %97 = vdwg.mxu0
  %v98 = vmax.f32 %v92, 0.0
  %v99 = vmax.f32 %v95, 0.0
  %v100 = vpack.c.bf16 %v99, %v98
  %v101 = vld [vmem:[%s3] sm:$0xf]
  %v102 = vld [vmem:[%s3 + $0x4] sm:$0xf]
  %v103 = vld [vmem:[%s3 + $0x8] sm:$0xf]
  %v104 = vld [vmem:[%s3 + $0xc] sm:$0xf]
  %v105 = vld [vmem:[%s3 + $0x10] sm:$0xf]
  %v106 = vld [vmem:[%s3 + $0x14] sm:$0xf]
  %v107 = vld [vmem:[%s3 + $0x18] sm:$0xf]
  %v108 = vld [vmem:[%s3 + $0x1c] sm:$0xf]
  %v109 = vld [vmem:[%s3 + $0x20] sm:$0xf]
  %v110 = vld [vmem:[%s3 + $0x24] sm:$0xf]
  %v111 = vld [vmem:[%s3 + $0x28] sm:$0xf]
  %v112 = vld [vmem:[%s3 + $0x2c] sm:$0xf]
  %v113 = vld [vmem:[%s3 + $0x30] sm:$0xf]
  %v114 = vld [vmem:[%s3 + $0x34] sm:$0xf]
  %v115 = vld [vmem:[%s3 + $0x38] sm:$0xf]
  %v116 = vld [vmem:[%s3 + $0x3c] sm:$0xf]
  %v117 = vld [vmem:[%s4] sm:$0x1]
  %v119 = vlaneseq
  %v120 = vshrl.u32 %v119, 7
  %v121 = vsub.s32 0, %v120
  %v122 = vrot.slane %v117, %v121
  %v140 = vunpack.c.l.b16 %v101
  %v141 = vunpack.c.l.b16 %v102
  %v142 = vunpack.c.l.b16 %v103
  %v143 = vunpack.c.l.b16 %v104
  %v144 = vunpack.c.l.b16 %v105
  %v145 = vunpack.c.l.b16 %v106
  %v146 = vunpack.c.l.b16 %v107
  %v147 = vunpack.c.l.b16 %v108
  %v148 = vunpack.c.l.b16 %v109
  %v149 = vunpack.c.l.b16 %v110
  %v150 = vunpack.c.l.b16 %v111
  %v151 = vunpack.c.l.b16 %v112
  %v152 = vunpack.c.l.b16 %v113
  %v153 = vunpack.c.l.b16 %v114
  %v154 = vunpack.c.l.b16 %v115
  %v155 = vunpack.c.l.b16 %v116
  %v156 = vpack.c.b16 %v141, %v140
  %v157 = vpack.c.b16 %v143, %v142
  %v158 = vpack.c.b16 %v145, %v144
  %v159 = vpack.c.b16 %v147, %v146
  %v160 = vpack.c.b16 %v149, %v148
  %v161 = vpack.c.b16 %v151, %v150
  %v162 = vpack.c.b16 %v153, %v152
  %v163 = vpack.c.b16 %v155, %v154
  %172 = vmatprep.subr.bf16.mxu0 0
  %173 = vmatpush1.bf16.msra.mxu0 %v156
  %174 = vmatprep.subr.bf16.mxu0 0
  %175 = vmatpush1.bf16.msra.mxu0 %v157
  %176 = vmatprep.subr.bf16.mxu0 0
  %177 = vmatpush1.bf16.msra.mxu0 %v158
  %178 = vmatprep.subr.bf16.mxu0 0
  %179 = vmatpush1.bf16.msra.mxu0 %v159
  %180 = vmatprep.subr.bf16.mxu0 0
  %181 = vmatpush1.bf16.msra.mxu0 %v160
  %182 = vmatprep.subr.bf16.mxu0 0
  %183 = vmatpush1.bf16.msra.mxu0 %v161
  %184 = vmatprep.subr.bf16.mxu0 0
  %185 = vmatpush1.bf16.msra.mxu0 %v162
  %186 = vmatprep.subr.bf16.mxu0 0
  %187 = vmatpush1.bf16.msra.mxu0 %v163
  %188 = vmatprep.subr.bf16.mxu0 0
  %189 = vmatpush1.bf16.msra.mxu0 0
  %190 = vmatprep.subr.bf16.mxu0 0
  %191 = vmatpush1.bf16.msra.mxu0 0
  %192 = vmatprep.subr.bf16.mxu0 0
  %193 = vmatpush1.bf16.msra.mxu0 0
  %194 = vmatprep.subr.bf16.mxu0 0
  %195 = vmatpush1.bf16.msra.mxu0 0
  %196 = vmatprep.subr.bf16.mxu0 0
  %197 = vmatpush1.bf16.msra.mxu0 0
  %198 = vmatprep.subr.bf16.mxu0 0
  %199 = vmatpush1.bf16.msra.mxu0 0
  %200 = vmatprep.subr.bf16.mxu0 0
  %201 = vmatpush1.bf16.msra.mxu0 0
  %202 = vmatprep.subr.bf16.mxu0 0
  %203 = vmatpush1.bf16.msra.mxu0 0
  %204 = vmatprep.mubr.bf16.mxu0 0
  %205 = vmatmul.mubr.bf16.gmra.mrb[0].mxu0 %v100
  %v206 = vpop.f32.mrb[0].mxu0
  %v207 = vadd.f32 %v122, %v206
  %v208 = vpop.f32.mrb[0].mxu0
  %v209 = vpop.f32.mrb[0].mxu0
  %v210 = vadd.f32 %v122, %v209
  %v211 = vpop.f32.mrb[0].mxu0
  %212 = vdwg.mxu0
  %v213 = vmax.f32 %v207, 0.0
  %v214 = vmax.f32 %v210, 0.0
  %v215 = vpack.c.bf16 %v214, %v213
  %v216 = vld [vmem:[%s5] sm:$0xf]
  %v217 = vld [vmem:[%s5 + $0x4] sm:$0xf]
  %v218 = vld [vmem:[%s5 + $0x8] sm:$0xf]
  %v219 = vld [vmem:[%s5 + $0xc] sm:$0xf]
  %v220 = vld [vmem:[%s5 + $0x10] sm:$0xf]
  %v221 = vld [vmem:[%s5 + $0x14] sm:$0xf]
  %v222 = vld [vmem:[%s5 + $0x18] sm:$0xf]
  %v223 = vld [vmem:[%s5 + $0x1c] sm:$0xf]
  %v224 = vld [vmem:[%s5 + $0x20] sm:$0xf]
  %v225 = vld [vmem:[%s5 + $0x24] sm:$0xf]
  %v226 = vld [vmem:[%s5 + $0x28] sm:$0xf]
  %v227 = vld [vmem:[%s5 + $0x2c] sm:$0xf]
  %v228 = vld [vmem:[%s5 + $0x30] sm:$0xf]
  %v229 = vld [vmem:[%s5 + $0x34] sm:$0xf]
  %v230 = vld [vmem:[%s5 + $0x38] sm:$0xf]
  %v231 = vld [vmem:[%s5 + $0x3c] sm:$0xf]
  %v232 = vld [vmem:[%s6] sm:$0x1]
  %v234 = vlaneseq
  %v235 = vshrl.u32 %v234, 7
  %v236 = vsub.s32 0, %v235
  %v237 = vrot.slane %v232, %v236
  %v255 = vunpack.c.l.b16 %v216
  %v256 = vunpack.c.l.b16 %v217
  %v257 = vunpack.c.l.b16 %v218
  %v258 = vunpack.c.l.b16 %v219
  %v259 = vunpack.c.l.b16 %v220
  %v260 = vunpack.c.l.b16 %v221
  %v261 = vunpack.c.l.b16 %v222
  %v262 = vunpack.c.l.b16 %v223
  %v263 = vunpack.c.l.b16 %v224
  %v264 = vunpack.c.l.b16 %v225
  %v265 = vunpack.c.l.b16 %v226
  %v266 = vunpack.c.l.b16 %v227
  %v267 = vunpack.c.l.b16 %v228
  %v268 = vunpack.c.l.b16 %v229
  %v269 = vunpack.c.l.b16 %v230
  %v270 = vunpack.c.l.b16 %v231
  %v271 = vpack.c.b16 %v256, %v255
  %v272 = vpack.c.b16 %v258, %v257
  %v273 = vpack.c.b16 %v260, %v259
  %v274 = vpack.c.b16 %v262, %v261
  %v275 = vpack.c.b16 %v264, %v263
  %v276 = vpack.c.b16 %v266, %v265
  %v277 = vpack.c.b16 %v268, %v267
  %v278 = vpack.c.b16 %v270, %v269
  %287 = vmatprep.subr.bf16.mxu0 0
  %288 = vmatpush1.bf16.msra.mxu0 %v271
  %289 = vmatprep.subr.bf16.mxu0 0
  %290 = vmatpush1.bf16.msra.mxu0 %v272
  %291 = vmatprep.subr.bf16.mxu0 0
  %292 = vmatpush1.bf16.msra.mxu0 %v273
  %293 = vmatprep.subr.bf16.mxu0 0
  %294 = vmatpush1.bf16.msra.mxu0 %v274
  %295 = vmatprep.subr.bf16.mxu0 0
  %296 = vmatpush1.bf16.msra.mxu0 %v275
  %297 = vmatprep.subr.bf16.mxu0 0
  %298 = vmatpush1.bf16.msra.mxu0 %v276
  %299 = vmatprep.subr.bf16.mxu0 0
  %300 = vmatpush1.bf16.msra.mxu0 %v277
  %301 = vmatprep.subr.bf16.mxu0 0
  %302 = vmatpush1.bf16.msra.mxu0 %v278
  %303 = vmatprep.subr.bf16.mxu0 0
  %304 = vmatpush1.bf16.msra.mxu0 0
  %305 = vmatprep.subr.bf16.mxu0 0
  %306 = vmatpush1.bf16.msra.mxu0 0
  %307 = vmatprep.subr.bf16.mxu0 0
  %308 = vmatpush1.bf16.msra.mxu0 0
  %309 = vmatprep.subr.bf16.mxu0 0
  %310 = vmatpush1.bf16.msra.mxu0 0
  %311 = vmatprep.subr.bf16.mxu0 0
  %312 = vmatpush1.bf16.msra.mxu0 0
  %313 = vmatprep.subr.bf16.mxu0 0
  %314 = vmatpush1.bf16.msra.mxu0 0
  %315 = vmatprep.subr.bf16.mxu0 0
  %316 = vmatpush1.bf16.msra.mxu0 0
  %317 = vmatprep.subr.bf16.mxu0 0
  %318 = vmatpush1.bf16.msra.mxu0 0
  %319 = vmatprep.mubr.bf16.mxu0 0
  %320 = vmatmul.mubr.bf16.gmra.mrb[0].mxu0 %v215
  %v321 = vpop.f32.mrb[0].mxu0
  %v322 = vadd.f32 %v237, %v321
  %v323 = vpop.f32.mrb[0].mxu0
  %v324 = vpop.f32.mrb[0].mxu0
  %v325 = vadd.f32 %v237, %v324
  %v326 = vpop.f32.mrb[0].mxu0
  %327 = vdwg.mxu0
  %vm328 = vcmask 64512
  %329 = vst.msk [vmem:[%s7] sm:$0xff] %vm328, %v322
  %330 = vst.msk [vmem:[%s7 + $0x8] sm:$0xff] %vm328, %v325
  // Predicated region
  $region30: #{mlp_policy_forward.1} parent=0 // pred_check
    _
  $region31: #{mlp_policy_forward.1} parent=0 // pred_check_branch
    %332 = sbr.rel (0) target = $region33
  $region32: #{mlp_policy_forward.1} parent=0 // pred_region
    _
  $region33: #{mlp_policy_forward.1} parent=0 // pred_fallthru
    _
  // Predicated region
  $region34: #{mlp_policy_forward.1} parent=0 // pred_check
    _
  $region35: #{mlp_policy_forward.1} parent=0 // pred_check_branch
    %334 = sbr.rel (0) target = $region37
  $region36: #{mlp_policy_forward.1} parent=0 // pred_region
    _
  $region37: #{mlp_policy_forward.1} parent=0 // pred_fallthru
    _

</llo_original>
